<compile_context>
chip_gen: v5e
topology: v5e:2x2
jax: 0.10.0
libtpu: 0.0.40
codegen_flags: <defaults>
</compile_context>

<pallas_src>
import functools

import jax
import jax.numpy as jnp
from jax.experimental import pallas as pl
from jax.experimental.pallas import tpu as pltpu


def _round_up(x, m):
    return ((x + m - 1) // m) * m


def _vmem_capacity_bytes():
    try:
        info = pltpu.get_tpu_info()
        cap = getattr(info, "vmem_capacity_bytes", None)
        if cap:
            return int(cap)
    except Exception:
        pass
    return 64 * 1024 * 1024  # conservative default (v7x per-core VMEM)


def _tile_footprint_bytes(t_hw, c_in, oup, out_itemsize):
    t = _round_up(t_hw, 128)
    c = _round_up(c_in, 8)
    o = _round_up(oup, 8)
    return (2 * c * t * 4                # double-buffered f32 activation tiles
            + 2 * o * c * 2              # bf16 integer-level weights
            + 4 * o * 128 * 4            # BN scale / bias (lane-padded)
            + 2 * o * t * out_itemsize   # double-buffered output tiles
            + c * t * 6 + o * t * 8)     # in-kernel temporaries (clip copy, bf16 levels, f32 y)


def _pick_hw_tile(hw, c_in, oup, out_itemsize, budget):
    """Largest spatial (lane) tile fitting the VMEM budget; whole extent if possible."""
    if _tile_footprint_bytes(hw, c_in, oup, out_itemsize) <= budget:
        return hw, 1                     # single lane-dense block, one DMA per batch
    for cand in (8192, 4096, 2048, 1024, 512, 256, 128):
        if cand < hw and _tile_footprint_bytes(cand, c_in, oup, out_itemsize) <= budget:
            return cand, pl.cdiv(hw, cand)
    # TODO(synk): add a C_in (K) grid axis with a VMEM accumulator if even a
    # 128-wide spatial tile does not fit (extremely large C_in).
    return 128, pl.cdiv(hw, 128)


def _fused_kernel(x_ref, w_ref, scale_ref, bias_ref, o_ref, *, clip_act, n_act):
    # ---- PACT activation quantization (VPU): relu -> clip -> integer levels ----
    # Levels 0 .. 2^n_bit - 1 are exact in bf16 (n_bit <= 8); 1/n_act is folded
    # into scale_ref, so no per-element divide is needed.
    x = jnp.clip(x_ref[...], 0.0, clip_act)
    x_lvl = jnp.round(x * n_act).astype(jnp.bfloat16)

    # ---- 1x1 conv == channel matmul (MXU, bf16 integer levels, f32 accumulate) ----
    y = jnp.dot(w_ref[...], x_lvl, preferred_element_type=jnp.float32)

    # ---- folded BatchNorm (includes weight scale and 1/n_act) + ReLU6 ----
    y = y * scale_ref[...] + bias_ref[...]
    o_ref[...] = jnp.clip(y, 0.0, 6.0).astype(o_ref.dtype)


def prepare_quan_conv2d_1x1_params(weight, clip_act, clip_w, n_bit,
                                    bn_gamma, bn_beta, bn_mean, bn_var, eps=1e-5):
    """One-time parameter prep: integer weight levels + BN affine with all scales folded."""
    assert n_bit <= 8, "integer levels are only exact in bf16 for n_bit <= 8"
    oup, c_in = weight.shape[0], weight.shape[1]
    levels = float(2 ** n_bit - 1)

    # HardQuantizeConv weight quantization, factored into integer levels * scale.
    gamma = levels / 2 ** (n_bit - 1)
    scaling = gamma * jnp.mean(jnp.abs(weight), axis=(1, 2, 3))          # (oup,)
    safe_scaling = jnp.where(scaling > 0, scaling, 1.0)                  # guard all-zero filters
    scaled = weight.reshape(oup, c_in) / safe_scaling[:, None]
    half = clip_w / 2.0
    clipped = jnp.clip(scaled, -half, half)
    nq = levels / clip_w
    lvl = jnp.round((clipped + half) * nq)                               # ints 0 .. 2^n-1
    w_int = (2.0 * lvl - levels).astype(jnp.bfloat16)                    # exact odd ints
    w_scale = scaling / (2.0 * nq)                                       # per-out-channel scale

    # Eval-mode BatchNorm folded with the weight scale and the PACT 1/n_act.
    # TODO(synk): training-mode BatchNorm (batch statistics) is not implemented.
    n_act = levels / clip_act
    inv_std = 1.0 / jnp.sqrt(bn_var + eps)
    bn_s = bn_gamma * inv_std
    scale = (bn_s * w_scale / n_act).reshape(oup, 1).astype(jnp.float32)
    bias = (bn_beta - bn_mean * bn_s).reshape(oup, 1).astype(jnp.float32)
    return w_int, scale, bias


def quan_conv2d_1x1_forward(x, w_int, scale, bias, clip_act, n_bit,
                            stride=1, out_dtype=jnp.float32):
    assert n_bit <= 8
    N, C_in, H, W = x.shape
    oup = w_int.shape[0]

    # strided 1x1 conv, padding 0 == spatial subsampling + channel matmul
    if stride > 1:
        x = x[:, :, ::stride, ::stride]   # single fused XLA slice pass (also shrinks data)
    Ho, Wo = x.shape[2], x.shape[3]
    HW = Ho * Wo
    xf = x.reshape(N, C_in, HW).astype(jnp.float32)   # contiguous reshape: no HBM pass

    n_act = float(2 ** n_bit - 1) / float(clip_act)
    out_itemsize = jnp.dtype(out_dtype).itemsize

    vmem_cap = _vmem_capacity_bytes()
    budget = vmem_cap // 3                # ~21 MiB on v7x, ~42 MiB on v5e/v6e
    T_HW, grid_hw = _pick_hw_tile(HW, C_in, oup, out_itemsize, budget)
    need = _tile_footprint_bytes(T_HW, C_in, oup, out_itemsize)
    vmem_limit = int(min(max(need * 5 // 4, 32 * 1024 * 1024), vmem_cap * 7 // 8))

    kernel = functools.partial(_fused_kernel, clip_act=float(clip_act), n_act=n_act)

    out = pl.pallas_call(
        kernel,
        out_shape=jax.ShapeDtypeStruct((N, oup, HW), out_dtype),
        grid_spec=pltpu.PrefetchScalarGridSpec(
            num_scalar_prefetch=0,
            grid=(N, grid_hw),
            in_specs=[
                # NCHW activations: (C_in, T_HW) tile per (batch, spatial-tile) step
                pl.BlockSpec((None, C_in, T_HW), lambda n, s: (n, 0, s)),
                # integer-level weights: constant block index -> fetched from HBM once
                pl.BlockSpec((oup, C_in), lambda n, s: (0, 0)),
                pl.BlockSpec((oup, 1), lambda n, s: (0, 0)),   # folded BN scale
                pl.BlockSpec((oup, 1), lambda n, s: (0, 0)),   # folded BN bias
            ],
            out_specs=pl.BlockSpec((None, oup, T_HW), lambda n, s: (n, 0, s)),
        ),
        compiler_params=pltpu.CompilerParams(
            dimension_semantics=("parallel", "parallel"),
            vmem_limit_bytes=vmem_limit,
        ),
    )(xf, w_int, scale, bias)

    return out.reshape(N, oup, Ho, Wo)    # contiguous reshape: no transpose, no HBM pass


def _reference(x, weight, clip_act, clip_w, n_bit,
               bn_gamma, bn_beta, bn_mean, bn_var, stride, eps=1e-5):
    """Pure-JAX f32 reference of the module's forward (eval-mode BN)."""
    n_act = (2 ** n_bit - 1) / clip_act
    xq = jnp.round(jnp.clip(x, 0.0, clip_act) * n_act) / n_act
    gamma = (2 ** n_bit - 1) / 2 ** (n_bit - 1)
    scaling = gamma * jnp.mean(jnp.abs(weight), axis=(1, 2, 3), keepdims=True)
    scaled = weight / scaling
    half = clip_w / 2.0
    clipped = jnp.clip(scaled, -half, half)
    nq = (2 ** n_bit - 1) / clip_w
    qw = scaling * (jnp.round((clipped + half) * nq) / nq - half)
    y = jax.lax.conv_general_dilated(xq, qw, (stride, stride), "VALID",
                                     dimension_numbers=("NCHW", "OIHW", "NCHW"))
    inv_std = 1.0 / jnp.sqrt(bn_var + eps)
    y = (y * (bn_gamma * inv_std)[None, :, None, None]
         + (bn_beta - bn_mean * bn_gamma * inv_std)[None, :, None, None])
    return jnp.clip(y, 0.0, 6.0)


if __name__ == "__main__":
    key = jax.random.PRNGKey(0)
    k_x, k_w = jax.random.split(key)

    # small shapes consistent with the module: NCHW input, 1x1 conv inp->oup
    N, inp, H, W = 2, 4, 16, 16
    oup, n_bit = 8, 4

    x = jax.random.normal(k_x, (N, inp, H, W), dtype=jnp.float32)

    # deterministic parameter init mirroring the module's __init__
    weight = (jax.random.uniform(k_w, (oup, inp, 1, 1), dtype=jnp.float32) - 0.5) * 0.001
    clip_act = 2.0      # PACT init_act_clip_val
    clip_w = 2.0        # HardQuantizeConv init_act_clip_val
    bn_gamma = jnp.ones((oup,), jnp.float32)    # BatchNorm2d defaults
    bn_beta = jnp.zeros((oup,), jnp.float32)
    bn_mean = jnp.zeros((oup,), jnp.float32)
    bn_var = jnp.ones((oup,), jnp.float32)

    # weight quantization / BN folding hoisted out of the per-call path
    w_int, scale, bias = prepare_quan_conv2d_1x1_params(
        weight, clip_act, clip_w, n_bit, bn_gamma, bn_beta, bn_mean, bn_var)

    for stride in (1, 2):
        y = quan_conv2d_1x1_forward(x, w_int, scale, bias, clip_act, n_bit, stride=stride)
        jax.block_until_ready(y)
        assert y.shape == (N, oup, H // stride, W // stride)

        y_ref = _reference(x, weight, clip_act, clip_w, n_bit,
                           bn_gamma, bn_beta, bn_mean, bn_var, stride)
        # exact integer levels on both operands -> only f32 rounding-order differences remain
        assert jnp.allclose(y, y_ref, rtol=2e-3, atol=1e-5), (
            float(jnp.max(jnp.abs(y - y_ref))))

    print("KERNEL_OK")
</pallas_src>

<mosaic_0001>
module attributes {stable_mosaic.version = 11 : i64} {
  func.func @_fused_kernel(%arg0: i32, %arg1: i32, %arg2: memref<1x4x256xf32, #tpu.memory_space<vmem>>, %arg3: memref<8x4xbf16, #tpu.memory_space<vmem>>, %arg4: memref<8x1xf32, #tpu.memory_space<vmem>>, %arg5: memref<8x1xf32, #tpu.memory_space<vmem>>, %arg6: memref<1x8x256xf32, #tpu.memory_space<vmem>>) attributes {dimension_semantics = [#tpu.dimension_semantics<parallel>, #tpu.dimension_semantics<parallel>], iteration_bounds = array<i64: 2, 1>, scalar_prefetch = 0 : i64, scratch_operands = 0 : i64, tpu.core_type = #tpu.core_type<tc>, window_params = [{transform_indices = @transform_0, window_bounds = array<i64: 1, 4, 256>}, {pipeline_mode = #tpu.pipeline_mode<synchronous>, transform_indices = @transform_1, window_bounds = array<i64: 8, 4>}, {pipeline_mode = #tpu.pipeline_mode<synchronous>, transform_indices = @transform_2, window_bounds = array<i64: 8, 1>}, {pipeline_mode = #tpu.pipeline_mode<synchronous>, transform_indices = @transform_3, window_bounds = array<i64: 8, 1>}, {transform_indices = @transform_4, window_bounds = array<i64: 1, 8, 256>}]} {
    %c0 = arith.constant 0 : index
    %c0_0 = arith.constant 0 : index
    %c0_1 = arith.constant 0 : index
    %0 = vector.load %arg2[%c0, %c0_0, %c0_1] : memref<1x4x256xf32, #tpu.memory_space<vmem>>, vector<1x4x256xf32>
    %1 = vector.shape_cast %0 : vector<1x4x256xf32> to vector<4x256xf32>
    %cst = arith.constant 0.000000e+00 : f32
    %cst_2 = arith.constant 2.000000e+00 : f32
    %2 = vector.broadcast %cst : f32 to vector<4x256xf32>
    %3 = arith.maximumf %2, %1 : vector<4x256xf32>
    %4 = vector.broadcast %cst_2 : f32 to vector<4x256xf32>
    %5 = arith.minimumf %4, %3 : vector<4x256xf32>
    %cst_3 = arith.constant 7.500000e+00 : f32
    %6 = vector.broadcast %cst_3 : f32 to vector<4x256xf32>
    %7 = arith.mulf %5, %6 : vector<4x256xf32>
    %8 = math.roundeven %7 : vector<4x256xf32>
    %9 = arith.truncf %8 : vector<4x256xf32> to vector<4x256xbf16>
    %c0_4 = arith.constant 0 : index
    %c0_5 = arith.constant 0 : index
    %10 = vector.load %arg3[%c0_4, %c0_5] : memref<8x4xbf16, #tpu.memory_space<vmem>>, vector<8x4xbf16>
    %cst_6 = arith.constant dense<0.000000e+00> : vector<8x256xf32>
    %11 = tpu.matmul %10, %9, %cst_6 {dimension_numbers = #tpu.dot_dimension_numbers<[1], [0], [0], [1], [0, 0, 1, 1], [], []>} : vector<8x4xbf16>, vector<4x256xbf16>, vector<8x256xf32> -> vector<8x256xf32>
    %c0_7 = arith.constant 0 : index
    %c0_8 = arith.constant 0 : index
    %12 = vector.load %arg4[%c0_7, %c0_8] : memref<8x1xf32, #tpu.memory_space<vmem>>, vector<8x1xf32>
    %13 = vector.broadcast %12 : vector<8x1xf32> to vector<8x256xf32>
    %14 = arith.mulf %11, %13 : vector<8x256xf32>
    %c0_9 = arith.constant 0 : index
    %c0_10 = arith.constant 0 : index
    %15 = vector.load %arg5[%c0_9, %c0_10] : memref<8x1xf32, #tpu.memory_space<vmem>>, vector<8x1xf32>
    %16 = vector.broadcast %15 : vector<8x1xf32> to vector<8x256xf32>
    %17 = arith.addf %14, %16 : vector<8x256xf32>
    %cst_11 = arith.constant 0.000000e+00 : f32
    %cst_12 = arith.constant 6.000000e+00 : f32
    %18 = vector.broadcast %cst_11 : f32 to vector<8x256xf32>
    %19 = arith.maximumf %18, %17 : vector<8x256xf32>
    %20 = vector.broadcast %cst_12 : f32 to vector<8x256xf32>
    %21 = arith.minimumf %20, %19 : vector<8x256xf32>
    %c0_13 = arith.constant 0 : index
    %c0_14 = arith.constant 0 : index
    %c0_15 = arith.constant 0 : index
    %22 = vector.load %arg6[%c0_13, %c0_14, %c0_15] : memref<1x8x256xf32, #tpu.memory_space<vmem>>, vector<1x8x256xf32>
    %23 = vector.shape_cast %22 : vector<1x8x256xf32> to vector<8x256xf32>
    %24 = vector.shape_cast %21 : vector<8x256xf32> to vector<1x8x256xf32>
    tpu.vector_store %arg6[%c0_13, %c0_14, %c0_15], %24 {strides = array<i32>} : memref<1x8x256xf32, #tpu.memory_space<vmem>>, vector<1x8x256xf32>,
    return
  }
  func.func @transform_0(%arg0: i32, %arg1: i32) -> (i32, i32, i32) {
    %c0_i32 = arith.constant 0 : i32
    %c0_i32_0 = arith.constant 0 : i32
    return %arg0, %c0_i32, %arg1 : i32, i32, i32
  }
  func.func @transform_1(%arg0: i32, %arg1: i32) -> (i32, i32) {
    %c0_i32 = arith.constant 0 : i32
    %c0_i32_0 = arith.constant 0 : i32
    %c0_i32_1 = arith.constant 0 : i32
    return %c0_i32, %c0_i32_0 : i32, i32
  }
  func.func @transform_2(%arg0: i32, %arg1: i32) -> (i32, i32) {
    %c0_i32 = arith.constant 0 : i32
    %c0_i32_0 = arith.constant 0 : i32
    %c0_i32_1 = arith.constant 0 : i32
    return %c0_i32, %c0_i32_0 : i32, i32
  }
  func.func @transform_3(%arg0: i32, %arg1: i32) -> (i32, i32) {
    %c0_i32 = arith.constant 0 : i32
    %c0_i32_0 = arith.constant 0 : i32
    %c0_i32_1 = arith.constant 0 : i32
    return %c0_i32, %c0_i32_0 : i32, i32
  }
  func.func @transform_4(%arg0: i32, %arg1: i32) -> (i32, i32, i32) {
    %c0_i32 = arith.constant 0 : i32
    %c0_i32_0 = arith.constant 0 : i32
    return %arg0, %c0_i32, %arg1 : i32, i32, i32
  }
}

</mosaic_0001>

<llo_original>
// kernel: tpu_custom_call.1
$region0: #{tpu_custom_call.1}
  #allocation0 [shape = 'u32[]', space=smem, size = 0x4, offset = 0x4, fixed_abs, tag = 'smem constant byte address 0x4 - core index']
  #allocation1 [shape = 'u32[72,128]{1,0:T(1,128)}', space=vmem, size = 0x9000, scoped, tag = 'internal scratch']
  %s0 = inlined_call_operand.vmem [shape: f32[2,4,256], index: 0, kind: input, shape index: {}]
  %s1 = inlined_call_operand.vmem [shape: bf16[8,4], index: 1, kind: input, shape index: {}]
  %s2 = inlined_call_operand.vmem [shape: f32[8,1], index: 2, kind: input, shape index: {}]
  %s3 = inlined_call_operand.vmem [shape: f32[8,1], index: 3, kind: input, shape index: {}]
  %s4 = inlined_call_operand.hbm [shape: f32[2,8,256], index: 4, kind: output, shape index: {}]
  %s5 = sld [smem:[#allocation0]]
  $region49: #{tpu_custom_call.1} parent=0
    _
  %s7 = ssub.s32 1, %s5
  %s8 = scalar_select 0, %s7, %s5
  $region1: #{tpu_custom_call.1} parent=0
    #allocation2 [shape = 'u8[16384]{0}', space=vmem, size = 0x4000, scoped, tag = 'output window, operand 0']
    #allocation3 [shape = 's32[2]{0}', space=sflag, size = 0x8, scoped, tag = 'scoped memory for tpu_custom_call.1']
    %9 = vsyncpa [#allocation3], 0
    %s10 = scalar_lea.sflag [#allocation3], 1
    %11 = vsyncpa %s10, 0
    loop: start=0, step=1, limit=4
    $region2: #{tpu_custom_call.1} parent=1 // loop_pre_header
      _
    $region3: #{tpu_custom_call.1} parent=1 // loop_header
      %s13 = sphi 0, %s17
      %p14 = scmp.ge.s32.totalorder %s13, 4
      %s20 = sphi 0, %s32
      %s21 = sphi 0, %s28
      %s22 = sphi 0, %s20
      %s23 = sphi 0, %s21
      %s24 = sphi 0, %s22
      %s25 = sphi 0, %s23
      %s37 = sphi 0, %s39
      %s40 = sphi 0, %s37
      %s41 = sphi 0, %s40
      %s57 = sphi 0, %s41
      %s61 = sphi 0, %s61
      %s63 = sphi 0, %s61
      %s64 = sphi 0, %s63
      %s78 = sphi 0, %s64
      %s82 = sphi 0, %s82
      %s84 = sphi 0, %s82
      %s85 = sphi 0, %s84
      %s99 = sphi 0, %s85
      %s103 = sphi 0, %s103
      %s105 = sphi 0, %s103
      %s106 = sphi 0, %s105
      %s120 = sphi 0, %s106
      %s128 = sphi 0, %s130
      %s131 = sphi 0, %s128
      %s132 = sphi 0, %s131
      %s148 = sphi 0, %s132
    $region4: #{tpu_custom_call.1} parent=1 // loop_header_branch
      %16 = sbr.rel (%p14) target = $region8
    $region5: #{tpu_custom_call.1} parent=1 // loop_body
      %s18 = ssub.s32 %s13, 1
      %s19 = ssub.s32 %s13, 2
      %s26 = sadd.s32 1, %s21
      %p27 = scmp.ge.s32.totalorder %s26, 1
      %s28 = scalar_select %p27, 0, %s26
      %s29 = sadd.s32 1, %s20
      %s30 = scalar_select %p27, %s29, %s20
      %p31 = scmp.ge.s32.totalorder %s30, 2
      %s32 = scalar_select %p31, 0, %s30
      %s33 = ssub.s32 %s20, %s32
      %s34 = ssub.s32 %s21, %s28
      %s35 = sor.u32 %s33, %s34
      %p36 = scmp.eq.s32.totalorder %s35, 0
      %s38 = sadd.s32 %s37, 1
      %s39 = scalar_select %p36, %s37, %s38
      %p42 = pneg %p36
      %p43 = scmp.eq.s32.totalorder %s13, 1
      %p44 = por %p42, %p43
      %p45 = scmp.ne.s32.totalorder %s37, %s40
      %p46 = scmp.eq.s32.totalorder %s13, 0
      %p47 = por %p45, %p46
      %p48 = scmp.ne.s32.totalorder %s37, %s40
      %p49 = scmp.eq.s32.totalorder %s18, 1
      %p50 = por %p48, %p49
      %p51 = scmp.ne.s32.totalorder %s40, %s41
      %p52 = scmp.eq.s32.totalorder %s18, 0
      %p53 = por %p51, %p52
      %p54 = scmp.ne.s32.totalorder %s40, %s41
      %p55 = scmp.eq.s32.totalorder %s19, 1
      %p56 = por %p54, %p55
      %p58 = scmp.ne.s32.totalorder %s41, %s57
      %p59 = scmp.eq.s32.totalorder %s19, 0
      %p60 = por %p58, %p59
      %s62 = sadd.s32 %s61, 1
      %p65 = scmp.eq.s32.totalorder %s13, 1
      %p66 = scmp.ne.s32.totalorder %s61, %s63
      %p67 = scmp.eq.s32.totalorder %s13, 0
      %p68 = por %p66, %p67
      %p69 = scmp.ne.s32.totalorder %s61, %s63
      %p70 = scmp.eq.s32.totalorder %s18, 1
      %p71 = por %p69, %p70
      %p72 = scmp.ne.s32.totalorder %s63, %s64
      %p73 = scmp.eq.s32.totalorder %s18, 0
      %p74 = por %p72, %p73
      %p75 = scmp.ne.s32.totalorder %s63, %s64
      %p76 = scmp.eq.s32.totalorder %s19, 1
      %p77 = por %p75, %p76
      %p79 = scmp.ne.s32.totalorder %s64, %s78
      %p80 = scmp.eq.s32.totalorder %s19, 0
      %p81 = por %p79, %p80
      %s83 = sadd.s32 %s82, 1
      %p86 = scmp.eq.s32.totalorder %s13, 1
      %p87 = scmp.ne.s32.totalorder %s82, %s84
      %p88 = scmp.eq.s32.totalorder %s13, 0
      %p89 = por %p87, %p88
      %p90 = scmp.ne.s32.totalorder %s82, %s84
      %p91 = scmp.eq.s32.totalorder %s18, 1
      %p92 = por %p90, %p91
      %p93 = scmp.ne.s32.totalorder %s84, %s85
      %p94 = scmp.eq.s32.totalorder %s18, 0
      %p95 = por %p93, %p94
      %p96 = scmp.ne.s32.totalorder %s84, %s85
      %p97 = scmp.eq.s32.totalorder %s19, 1
      %p98 = por %p96, %p97
      %p100 = scmp.ne.s32.totalorder %s85, %s99
      %p101 = scmp.eq.s32.totalorder %s19, 0
      %p102 = por %p100, %p101
      %s104 = sadd.s32 %s103, 1
      %p107 = scmp.eq.s32.totalorder %s13, 1
      %p108 = scmp.ne.s32.totalorder %s103, %s105
      %p109 = scmp.eq.s32.totalorder %s13, 0
      %p110 = por %p108, %p109
      %p111 = scmp.ne.s32.totalorder %s103, %s105
      %p112 = scmp.eq.s32.totalorder %s18, 1
      %p113 = por %p111, %p112
      %p114 = scmp.ne.s32.totalorder %s105, %s106
      %p115 = scmp.eq.s32.totalorder %s18, 0
      %p116 = por %p114, %p115
      %p117 = scmp.ne.s32.totalorder %s105, %s106
      %p118 = scmp.eq.s32.totalorder %s19, 1
      %p119 = por %p117, %p118
      %p121 = scmp.ne.s32.totalorder %s106, %s120
      %p122 = scmp.eq.s32.totalorder %s19, 0
      %p123 = por %p121, %p122
      %s124 = ssub.s32 %s20, %s32
      %s125 = ssub.s32 %s21, %s28
      %s126 = sor.u32 %s124, %s125
      %p127 = scmp.eq.s32.totalorder %s126, 0
      %s129 = sadd.s32 %s128, 1
      %s130 = scalar_select %p127, %s128, %s129
      %p133 = pneg %p127
      %p134 = scmp.eq.s32.totalorder %s13, 1
      %p135 = por %p133, %p134
      %p136 = scmp.ne.s32.totalorder %s128, %s131
      %p137 = scmp.eq.s32.totalorder %s13, 0
      %p138 = por %p136, %p137
      %p139 = scmp.ne.s32.totalorder %s128, %s131
      %p140 = scmp.eq.s32.totalorder %s18, 1
      %p141 = por %p139, %p140
      %p142 = scmp.ne.s32.totalorder %s131, %s132
      %p143 = scmp.eq.s32.totalorder %s18, 0
      %p144 = por %p142, %p143
      %p145 = scmp.ne.s32.totalorder %s131, %s132
      %p146 = scmp.eq.s32.totalorder %s19, 1
      %p147 = por %p145, %p146
      %p149 = scmp.ne.s32.totalorder %s132, %s148
      %p150 = scmp.eq.s32.totalorder %s19, 0
      %p151 = por %p149, %p150
      %p152 = scmp.le.s32.totalorder 1, %s13
      %p153 = scmp.lt.s32.totalorder %s13, 3
      %p154 = pnand %p152, %p153
      %p155 = pneg %p154
      // Predicated region
      $region9: #{tpu_custom_call.1} parent=5 // pred_check
        _
      $region10: #{tpu_custom_call.1} parent=5 // pred_check_branch
        %157 = sbr.rel (%p154) target = $region12
      $region11: #{tpu_custom_call.1} parent=5 // pred_region
        %s158 = ssub.s32 %s13, 1
        // Predicated region
        $region13: #{tpu_custom_call.1} parent=11 // pred_check
          %p159 = pneg %p74
        $region14: #{tpu_custom_call.1} parent=11 // pred_check_branch
          %161 = sbr.rel (%p159) target = $region16
        $region15: #{tpu_custom_call.1} parent=11 // pred_region
          _
        $region16: #{tpu_custom_call.1} parent=11 // pred_fallthru
          _
        // Predicated region
        $region17: #{tpu_custom_call.1} parent=11 // pred_check
          %p162 = pneg %p95
        $region18: #{tpu_custom_call.1} parent=11 // pred_check_branch
          %164 = sbr.rel (%p162) target = $region20
        $region19: #{tpu_custom_call.1} parent=11 // pred_region
          _
        $region20: #{tpu_custom_call.1} parent=11 // pred_fallthru
          _
        // Predicated region
        $region21: #{tpu_custom_call.1} parent=11 // pred_check
          %p165 = pneg %p116
        $region22: #{tpu_custom_call.1} parent=11 // pred_check_branch
          %167 = sbr.rel (%p165) target = $region24
        $region23: #{tpu_custom_call.1} parent=11 // pred_region
          _
        $region24: #{tpu_custom_call.1} parent=11 // pred_fallthru
          _
      $region12: #{tpu_custom_call.1} parent=5 // pred_fallthru
        _
      %p168 = scmp.lt.s32.totalorder %s13, 2
      // Predicated region
      $region25: #{tpu_custom_call.1} parent=5 // pred_check
        %p169 = pneg %p168
      $region26: #{tpu_custom_call.1} parent=5 // pred_check_branch
        %171 = sbr.rel (%p169) target = $region28
      $region27: #{tpu_custom_call.1} parent=5 // pred_region
        // Predicated region
        $region29: #{tpu_custom_call.1} parent=27 // pred_check
          %p172 = pneg %p47
        $region30: #{tpu_custom_call.1} parent=27 // pred_check_branch
          %174 = sbr.rel (%p172) target = $region32
        $region31: #{tpu_custom_call.1} parent=27 // pred_region
          %s175 = smul.u32 2, %s21
          %p176 = scmp.lt.s32.totalorder %s20, 1
          %s177 = scalar_select %p176, %s20, 1
          %p178 = scmp.lt.s32.totalorder %s175, 1
          %s179 = scalar_select %p178, %s175, 1
          %s180 = smul.addr %s177, 2
          %s181 = sadd.s32 %s179, %s180
          %s182 = smul.addr %s181, 4
          %s183 = scalar_lea.vmem %s0, %s182
          %s184 = smul.u32 2, %s21
        $region32: #{tpu_custom_call.1} parent=27 // pred_fallthru
          _
      $region28: #{tpu_custom_call.1} parent=5 // pred_fallthru
        _
      %p185 = scmp.le.s32.totalorder 1, %s13
      %p186 = scmp.lt.s32.totalorder %s13, 3
      %p187 = pnand %p185, %p186
      %p188 = pneg %p187
      // Predicated region
      $region33: #{tpu_custom_call.1} parent=5 // pred_check
        _
      $region34: #{tpu_custom_call.1} parent=5 // pred_check_branch
        %190 = sbr.rel (%p187) target = $region36
      $region35: #{tpu_custom_call.1} parent=5 // pred_region
        %s191 = ssub.s32 %s13, 1
        %s192 = smul.u32 2, %s23
        %p193 = scmp.lt.s32.totalorder %s22, 1
        %s194 = scalar_select %p193, %s22, 1
        %p195 = scmp.lt.s32.totalorder %s192, 1
        %s196 = scalar_select %p195, %s192, 1
        %s197 = smul.addr %s194, 2
        %s198 = sadd.s32 %s196, %s197
        %s199 = smul.addr %s198, 4
        %s200 = scalar_lea.vmem %s0, %s199
        %p201 = pneg %p53
        %p202 = pneg %p50
        %p203 = pneg %p74
        %p204 = pneg %p71
        %p205 = pneg %p95
        %p206 = pneg %p92
        %p207 = pneg %p116
        %p208 = pneg %p113
        %p209 = pneg %p144
        %p210 = pneg %p141
        %s211 = sand.u32 %s131, 1
        %s212 = scalar_lea.sflag [#allocation3], %s211
        %s213 = sand.u32 %s131, 1
        %s214 = smul.addr %s213, 16
        %s215 = scalar_lea.vmem [#allocation2], %s214
        %s216 = smul.u32 2, %s23
        %p217 = scmp.lt.s32.totalorder %s22, 1
        %s218 = scalar_select %p217, %s22, 1
        %p219 = scmp.lt.s32.totalorder %s216, 1
        %s220 = scalar_select %p219, %s216, 1
        %s221 = smul.addr %s218, 2
        %s222 = sadd.s32 %s220, %s221
        %s223 = smul.addr %s222, 4
        %s224 = scalar_lea.vmem %s0, %s223
        %s225 = smul.u32 2, %s23
        %s226 = smul.u32 2, %s23
        %v228 = vld [vmem:[%s224] sm:$0xff]
        %v229 = vmax.f32 %v228, 0.0
        %v230 = vmin.f32 %v229, 2.0
        %v231 = vmul.f32 %v230, 7.5
        %v232 = vround.ne.pseudo %v231
        %234 = vst [vmem:[#allocation1] ss:$2 sm:$0xff] %v232
        %v235 = vld.sshfl [vmem:[#allocation1] sm:$0xff pattern:$0x75316420]
        %v236 = vld.sshfl [vmem:[#allocation1 + $0x8] sm:$0xff pattern:$0x75316420]
        %v239 = vpack.c.bf16 %v235, %v235
        %v240 = vpack.c.bf16 %v236, %v236
        %v241 = vld [vmem:[%s1] sm:$0xf]
        %vm242 = vcmask 31744
        %v244 = vsel %vm242, %v241, 0
        %vm246 = vcmask 1041408
        %v248 = vsel %vm246, %v239, 0
        %v251 = vsel %vm246, %v240, 0
        %253 = vmatpush.bf16.msra.mxu0 0
        %254 = vmatpush.bf16.msra.mxu0 0
        %255 = vmatpush.bf16.msra.mxu0 0
        %256 = vmatpush.bf16.msra.mxu0 0
        %257 = vmatpush.bf16.msra.mxu0 0
        %258 = vmatpush.bf16.msra.mxu0 0
        %259 = vmatpush.bf16.msra.mxu0 0
        %260 = vmatpush.bf16.msra.mxu0 %v248
        %261 = vmatmul.bf16.gmra.mxu0 %v244
        %v262 = vpop.f32.mrf.mxu0
        %v263 = vadd.f32 0.0, %v262
        %v264 = vpop.f32.mrf.mxu0
        %265 = vdwg.mxu0
        %266 = vmatpush.bf16.msra.mxu0 0
        %267 = vmatpush.bf16.msra.mxu0 0
        %268 = vmatpush.bf16.msra.mxu0 0
        %269 = vmatpush.bf16.msra.mxu0 0
        %270 = vmatpush.bf16.msra.mxu0 0
        %271 = vmatpush.bf16.msra.mxu0 0
        %272 = vmatpush.bf16.msra.mxu0 0
        %273 = vmatpush.bf16.msra.mxu0 %v251
        %274 = vmatmul.bf16.gmra.mxu0 %v244
        %v275 = vpop.f32.mrf.mxu0
        %v276 = vadd.f32 0.0, %v275
        %v277 = vpop.f32.mrf.mxu0
        %278 = vdwg.mxu0
        %v279 = vld [vmem:[%s2] sm:$0xff]
        %281 = vset.pattern.permute.xlu0 0
        %282 = vperm.xlu0 %281, %v279
        %v283 = vpop.permute.xlu0 %282
        %v285 = vmul.f32 %v263, %v283
        %v286 = vmul.f32 %v276, %v283
        %v287 = vld [vmem:[%s3] sm:$0xff]
        %289 = vset.pattern.permute.xlu0 0
        %290 = vperm.xlu0 %289, %v287
        %v291 = vpop.permute.xlu0 %290
        %v293 = vadd.f32 %v285, %v291
        %v294 = vadd.f32 %v286, %v291
        %v295 = vmax.f32 %v293, 0.0
        %v296 = vmax.f32 %v294, 0.0
        %v297 = vmin.f32 %v295, 6.0
        %v298 = vmin.f32 %v296, 6.0
        %299 = vst [vmem:[%s215] sm:$0xff] %v297
        %300 = vst [vmem:[%s215 + $0x8] sm:$0xff] %v298
        %s301 = sand.u32 %s131, 1
        %s302 = scalar_lea.sflag [#allocation3], %s301
        %s303 = sand.u32 %s131, 1
        %s304 = smul.addr %s303, 16
        %s305 = scalar_lea.vmem [#allocation2], %s304
        // Predicated region
        $region37: #{tpu_custom_call.1} parent=35 // pred_check
          %p306 = pneg %p141
        $region38: #{tpu_custom_call.1} parent=35 // pred_check_branch
          %308 = sbr.rel (%p306) target = $region40
        $region39: #{tpu_custom_call.1} parent=35 // pred_region
          %s309 = smul.u32 2, %s23
          %311 = vsyncadd %s302, 0
          %s312 = smul.addr %s22, 2
          %s313 = sadd.s32 %s309, %s312
          %s314 = smul.addr %s313, 8
          %s315 = scalar_lea.hbm %s4, %s314
          %s317 = sshll.u32 %s305, 4
          %s318 = int_to_ptr.vmem [resolvable:$true] %s317
          %s319 = sshll.u32 %s315, 4
          %s320 = int_to_ptr.hbm [resolvable:$true] %s319
          %322 = dma.vmem_to_hbm [thread:$0]  %s318, 256, %s320, %s302
        $region40: #{tpu_custom_call.1} parent=35 // pred_fallthru
          _
      $region36: #{tpu_custom_call.1} parent=5 // pred_fallthru
        _
      %p323 = scmp.le.s32.totalorder 2, %s13
      // Predicated region
      $region41: #{tpu_custom_call.1} parent=5 // pred_check
        %p324 = pneg %p323
      $region42: #{tpu_custom_call.1} parent=5 // pred_check_branch
        %326 = sbr.rel (%p324) target = $region44
      $region43: #{tpu_custom_call.1} parent=5 // pred_region
        %s327 = ssub.s32 %s13, 2
        // Predicated region
        $region45: #{tpu_custom_call.1} parent=43 // pred_check
          %p328 = pneg %p147
        $region46: #{tpu_custom_call.1} parent=43 // pred_check_branch
          %330 = sbr.rel (%p328) target = $region48
        $region47: #{tpu_custom_call.1} parent=43 // pred_region
          %s331 = sand.u32 %s132, 1
          %s332 = scalar_lea.sflag [#allocation3], %s331
          %s333 = sand.u32 %s132, 1
          %s334 = smul.addr %s333, 16
          %s335 = scalar_lea.vmem [#allocation2], %s334
          %337 = dma.done %s332, 256
        $region48: #{tpu_custom_call.1} parent=43 // pred_fallthru
          _
      $region44: #{tpu_custom_call.1} parent=5 // pred_fallthru
        _
    $region6: #{tpu_custom_call.1} parent=1 // loop_footer
      %s17 = sadd.s32 1, %s13
    $region7: #{tpu_custom_call.1} parent=1 // loop_footer_branch
      %12 = sbr.rel target = $region3
    $region8: #{tpu_custom_call.1} parent=1 // loop_exit
      _
    %338 = vsyncpa [#allocation3], 1
    %s339 = scalar_lea.sflag [#allocation3], 1
    %340 = vsyncpa %s339, 1

</llo_original>
